<compile_context>
chip_gen: v7x
topology: tpu7x:2x2x1
jax: 0.10.0
libtpu: 0.0.40
codegen_flags: <defaults>
</compile_context>

<pallas_src>
import functools

import numpy as np
import jax
import jax.numpy as jnp
from jax.experimental import pallas as pl
from jax.experimental.pallas import tpu as pltpu


def critic_kernel(s_ref, a_ref,
                  w1_ref, b1_ref,
                  w2s_ref, w2a_ref, b2_ref,
                  w3_ref, b3_ref,
                  o_ref, *, mxu_dtype):
    md = mxu_dtype

    # fcs1: relu(state @ W1 + b1)   (MXU in bf16/f32-acc, epilogue in f32)
    xs = jnp.dot(s_ref[...].astype(md), w1_ref[...].astype(md),
                 preferred_element_type=jnp.float32)
    xs = jnp.maximum(xs + b1_ref[...], 0.0)

    # fc2 on concat([xs, action]) == xs @ W2s + action @ W2a
    h = jnp.dot(xs.astype(md), w2s_ref[...].astype(md),
                preferred_element_type=jnp.float32)
    # Action branch on the VPU: action_size is tiny, so a K=2 GEMM would waste
    # MXU pushes.  Unrolled outer-product multiply-adds instead.
    a = a_ref[...]
    w2a = w2a_ref[...]
    for j in range(a.shape[1]):          # static, small (action_size)
        h = h + a[:, j:j + 1] * w2a[j:j + 1, :]
    h = jnp.maximum(h + b2_ref[...], 0.0)

    # dropout(p=0.2): identity in eval mode.
    # TODO(synk): training-mode dropout (pltpu.prng_seed/prng_random_bits mask
    # + 1/(1-p) scale) not emitted; eval semantics used.

    # fc3 as a lane-dense row: q[0, b] = sum_f w3[0, f] * h[b, f] + b3.
    # NT contraction ((1,),(1,)) puts batch on the lane axis -> dense row store.
    q = jax.lax.dot_general(
        w3_ref[...].astype(md), h.astype(md),
        dimension_numbers=(((1,), (1,)), ((), ())),
        preferred_element_type=jnp.float32)
    o_ref[...] = q + b3_ref[...]


def _round_up(x, m):
    return ((x + m - 1) // m) * m


def _choose_batch_tile(batch, tile_batch):
    """Pick the batch tile.

    Small batches: one tile covering the whole batch (block == full dim).
    Larger batches: a multiple of 128, capped at tile_batch, and bounded so the
    grid has at least 2 steps (both v7x TensorCores get work).
    """
    if batch < 256:
        return batch
    half = _round_up(pl.cdiv(batch, 2), 128)
    return max(128, min(tile_batch, half))


def critic_forward(state, action, params, *, tile_batch=2048, mxu_bf16=True):
    """Run the Critic forward pass as a single batch-tiled Pallas TPU kernel."""
    w1, b1, w2s, w2a, b2, w3_row, b3 = params
    B, S = state.shape
    A = action.shape[1]
    F1 = w1.shape[1]
    F2 = w2s.shape[1]

    assert tile_batch % 128 == 0, "tile_batch must be a multiple of 128"
    tb = _choose_batch_tile(B, tile_batch)
    grid = pl.cdiv(B, tb)   # ragged last block handled by the pipeline (no pad copy)

    batch_tile = lambda i: (i, 0)   # tiled over the batch grid axis
    resident = lambda i: (0, 0)     # same block every step -> stays in VMEM

    kernel = functools.partial(
        critic_kernel,
        mxu_dtype=jnp.bfloat16 if mxu_bf16 else jnp.float32)

    out = pl.pallas_call(
        kernel,
        out_shape=jax.ShapeDtypeStruct((1, B), jnp.float32),
        grid=(grid,),
        in_specs=[
            pl.BlockSpec((tb, S), batch_tile),   # state tile
            pl.BlockSpec((tb, A), batch_tile),   # action tile
            pl.BlockSpec((S, F1), resident),     # W1   (resident weight)
            pl.BlockSpec((1, F1), resident),     # b1
            pl.BlockSpec((F1, F2), resident),    # W2 state-branch block
            pl.BlockSpec((A, F2), resident),     # W2 action-branch block
            pl.BlockSpec((1, F2), resident),     # b2
            pl.BlockSpec((1, F2), resident),     # w3 as a row
            pl.BlockSpec((1, 1), resident),      # b3
        ],
        out_specs=pl.BlockSpec((1, tb), lambda i: (0, i)),
        compiler_params=pltpu.CompilerParams(
            dimension_semantics=("parallel",),
            vmem_limit_bytes=32 * 1024 * 1024),
    )(state, action, w1, b1, w2s, w2a, b2, w3_row, b3)

    return out[0, :].reshape(B, 1)


def init_critic_params(key, state_size, action_size,
                       units_fcs1=512, units_fc2=256):
    """Deterministic parameter init mirroring Critic.reset_parameters().

    Note: the PyTorch code uses limit = 1/sqrt(weight.size(0)) i.e.
    1/sqrt(out_features) for fcs1 and fc2 (kept intentionally for parity),
    and +/-0.00275 for fc3.  Weights are returned already transposed to
    [in, out]; W2 is pre-split into its state/action branches and W3 is
    returned as a (1, units_fc2) row for the lane-dense fc3 path.
    """
    k1, k2, k3, kb1, kb2, kb3 = jax.random.split(key, 6)

    lim1 = 1.0 / np.sqrt(units_fcs1)
    lim2 = 1.0 / np.sqrt(units_fc2)
    lim3 = 0.00275

    # [in, out] layout
    w1 = jax.random.uniform(k1, (state_size, units_fcs1),
                            minval=-lim1, maxval=lim1, dtype=jnp.float32)
    w2 = jax.random.uniform(k2, (units_fcs1 + action_size, units_fc2),
                            minval=-lim2, maxval=lim2, dtype=jnp.float32)
    w3_col = jax.random.uniform(k3, (units_fc2, 1),
                                minval=-lim3, maxval=lim3, dtype=jnp.float32)

    # Biases: PyTorch default-style uniform(+/- 1/sqrt(fan_in)).
    b1 = jax.random.uniform(kb1, (1, units_fcs1),
                            minval=-1.0 / np.sqrt(state_size),
                            maxval=1.0 / np.sqrt(state_size), dtype=jnp.float32)
    b2 = jax.random.uniform(kb2, (1, units_fc2),
                            minval=-1.0 / np.sqrt(units_fcs1 + action_size),
                            maxval=1.0 / np.sqrt(units_fcs1 + action_size),
                            dtype=jnp.float32)
    b3 = jax.random.uniform(kb3, (1, 1),
                            minval=-1.0 / np.sqrt(units_fc2),
                            maxval=1.0 / np.sqrt(units_fc2), dtype=jnp.float32)

    # Split W2 into the state-branch and action-branch blocks (concat fusion).
    w2s = w2[:units_fcs1, :]
    w2a = w2[units_fcs1:, :]
    w3_row = w3_col.T  # (1, units_fc2)

    params = (w1, b1, w2s, w2a, b2, w3_row, b3)
    aux = (w2, w3_col)  # full-form weights for the pure-JAX reference
    return params, aux


def critic_reference(state, action, params_full):
    """Pure-JAX f32 reference matching the PyTorch forward (eval mode)."""
    w1, b1, w2, b2, w3, b3 = params_full
    xs = jax.nn.relu(state @ w1 + b1)
    x = jnp.concatenate([xs, action], axis=1)
    x = jax.nn.relu(x @ w2 + b2)
    return x @ w3 + b3


if __name__ == "__main__":
    key = jax.random.PRNGKey(0)
    ks, ka, kp, ks2, ka2 = jax.random.split(key, 5)

    state_size = 24    # Tennis env: 24-dim state
    action_size = 2    # Tennis env: 2-dim action
    units_fcs1 = 64    # small demo sizes
    units_fc2 = 32

    params, (w2_full, w3_col) = init_critic_params(
        kp, state_size, action_size, units_fcs1, units_fc2)
    w1, b1, w2s, w2a, b2, w3_row, b3 = params
    ref_params = (w1, b1, w2_full, b2, w3_col, b3)

    # --- small single-tile case, f32 MXU path: exact parity check ---
    batch = 8
    state = jax.random.normal(ks, (batch, state_size), dtype=jnp.float32)
    action = jax.random.normal(ka, (batch, action_size), dtype=jnp.float32)

    q = jax.block_until_ready(
        critic_forward(state, action, params, mxu_bf16=False))
    q_ref = critic_reference(state, action, ref_params)
    np.testing.assert_allclose(np.asarray(q), np.asarray(q_ref),
                               rtol=1e-5, atol=1e-5)
    assert q.shape == (batch, 1)

    # --- same inputs, default bf16-MXU path (looser tolerance) ---
    q_bf = jax.block_until_ready(critic_forward(state, action, params))
    np.testing.assert_allclose(np.asarray(q_bf), np.asarray(q_ref),
                               rtol=2e-2, atol=2e-2)

    # --- larger batch exercising the multi-step, ragged-last-block grid ---
    batch2 = 1030
    state2 = jax.random.normal(ks2, (batch2, state_size), dtype=jnp.float32)
    action2 = jax.random.normal(ka2, (batch2, action_size), dtype=jnp.float32)

    q2 = jax.block_until_ready(critic_forward(state2, action2, params))
    q2_ref = critic_reference(state2, action2, ref_params)
    np.testing.assert_allclose(np.asarray(q2), np.asarray(q2_ref),
                               rtol=2e-2, atol=2e-2)
    assert q2.shape == (batch2, 1)

    print("KERNEL_OK")
</pallas_src>

<mosaic_0001>
module attributes {stable_mosaic.version = 11 : i64} {
  func.func @critic_kernel(%arg0: i32, %arg1: memref<8x24xf32, #tpu.memory_space<vmem>>, %arg2: memref<8x2xf32, #tpu.memory_space<vmem>>, %arg3: memref<24x64xf32, #tpu.memory_space<vmem>>, %arg4: memref<1x64xf32, #tpu.memory_space<vmem>>, %arg5: memref<64x32xf32, #tpu.memory_space<vmem>>, %arg6: memref<2x32xf32, #tpu.memory_space<vmem>>, %arg7: memref<1x32xf32, #tpu.memory_space<vmem>>, %arg8: memref<1x32xf32, #tpu.memory_space<vmem>>, %arg9: memref<1x1xf32, #tpu.memory_space<vmem>>, %arg10: memref<1x8xf32, #tpu.memory_space<vmem>>) attributes {dimension_semantics = [#tpu.dimension_semantics<parallel>], iteration_bounds = array<i64: 1>, scalar_prefetch = 0 : i64, scratch_operands = 0 : i64, tpu.core_type = #tpu.core_type<tc>, window_params = [{transform_indices = @transform_0, window_bounds = array<i64: 8, 24>}, {transform_indices = @transform_1, window_bounds = array<i64: 8, 2>}, {pipeline_mode = #tpu.pipeline_mode<synchronous>, transform_indices = @transform_2, window_bounds = array<i64: 24, 64>}, {pipeline_mode = #tpu.pipeline_mode<synchronous>, transform_indices = @transform_3, window_bounds = array<i64: 1, 64>}, {pipeline_mode = #tpu.pipeline_mode<synchronous>, transform_indices = @transform_4, window_bounds = array<i64: 64, 32>}, {pipeline_mode = #tpu.pipeline_mode<synchronous>, transform_indices = @transform_5, window_bounds = array<i64: 2, 32>}, {pipeline_mode = #tpu.pipeline_mode<synchronous>, transform_indices = @transform_6, window_bounds = array<i64: 1, 32>}, {pipeline_mode = #tpu.pipeline_mode<synchronous>, transform_indices = @transform_7, window_bounds = array<i64: 1, 32>}, {pipeline_mode = #tpu.pipeline_mode<synchronous>, transform_indices = @transform_8, window_bounds = array<i64: 1, 1>}, {transform_indices = @transform_9, window_bounds = array<i64: 1, 8>}]} {
    %c0 = arith.constant 0 : index
    %c0_0 = arith.constant 0 : index
    %0 = vector.load %arg1[%c0, %c0_0] : memref<8x24xf32, #tpu.memory_space<vmem>>, vector<8x24xf32>
    %c0_1 = arith.constant 0 : index
    %c0_2 = arith.constant 0 : index
    %1 = vector.load %arg3[%c0_1, %c0_2] : memref<24x64xf32, #tpu.memory_space<vmem>>, vector<24x64xf32>
    %cst = arith.constant dense<0.000000e+00> : vector<8x64xf32>
    %2 = tpu.matmul %0, %1, %cst {dimension_numbers = #tpu.dot_dimension_numbers<[1], [0], [0], [1], [0, 0, 1, 1], [], []>} : vector<8x24xf32>, vector<24x64xf32>, vector<8x64xf32> -> vector<8x64xf32>
    %c0_3 = arith.constant 0 : index
    %c0_4 = arith.constant 0 : index
    %3 = vector.load %arg4[%c0_3, %c0_4] : memref<1x64xf32, #tpu.memory_space<vmem>>, vector<1x64xf32>
    %4 = vector.broadcast %3 : vector<1x64xf32> to vector<8x64xf32>
    %5 = arith.addf %2, %4 : vector<8x64xf32>
    %cst_5 = arith.constant 0.000000e+00 : f32
    %6 = vector.broadcast %cst_5 : f32 to vector<8x64xf32>
    %7 = arith.maximumf %5, %6 : vector<8x64xf32>
    %c0_6 = arith.constant 0 : index
    %c0_7 = arith.constant 0 : index
    %8 = vector.load %arg5[%c0_6, %c0_7] : memref<64x32xf32, #tpu.memory_space<vmem>>, vector<64x32xf32>
    %cst_8 = arith.constant dense<0.000000e+00> : vector<8x32xf32>
    %9 = tpu.matmul %7, %8, %cst_8 {dimension_numbers = #tpu.dot_dimension_numbers<[1], [0], [0], [1], [0, 0, 1, 1], [], []>} : vector<8x64xf32>, vector<64x32xf32>, vector<8x32xf32> -> vector<8x32xf32>
    %c0_9 = arith.constant 0 : index
    %c0_10 = arith.constant 0 : index
    %10 = vector.load %arg2[%c0_9, %c0_10] : memref<8x2xf32, #tpu.memory_space<vmem>>, vector<8x2xf32>
    %c0_11 = arith.constant 0 : index
    %c0_12 = arith.constant 0 : index
    %11 = vector.load %arg6[%c0_11, %c0_12] : memref<2x32xf32, #tpu.memory_space<vmem>>, vector<2x32xf32>
    %12 = vector.extract_strided_slice %10 {offsets = [0, 0], sizes = [8, 1], strides = [1, 1]} : vector<8x2xf32> to vector<8x1xf32>
    %13 = vector.extract_strided_slice %11 {offsets = [0, 0], sizes = [1, 32], strides = [1, 1]} : vector<2x32xf32> to vector<1x32xf32>
    %14 = vector.broadcast %12 : vector<8x1xf32> to vector<8x32xf32>
    %15 = vector.broadcast %13 : vector<1x32xf32> to vector<8x32xf32>
    %16 = arith.mulf %14, %15 : vector<8x32xf32>
    %17 = arith.addf %9, %16 : vector<8x32xf32>
    %18 = vector.extract_strided_slice %10 {offsets = [0, 1], sizes = [8, 1], strides = [1, 1]} : vector<8x2xf32> to vector<8x1xf32>
    %19 = vector.extract_strided_slice %11 {offsets = [1, 0], sizes = [1, 32], strides = [1, 1]} : vector<2x32xf32> to vector<1x32xf32>
    %20 = vector.broadcast %18 : vector<8x1xf32> to vector<8x32xf32>
    %21 = vector.broadcast %19 : vector<1x32xf32> to vector<8x32xf32>
    %22 = arith.mulf %20, %21 : vector<8x32xf32>
    %23 = arith.addf %17, %22 : vector<8x32xf32>
    %c0_13 = arith.constant 0 : index
    %c0_14 = arith.constant 0 : index
    %24 = vector.load %arg7[%c0_13, %c0_14] : memref<1x32xf32, #tpu.memory_space<vmem>>, vector<1x32xf32>
    %25 = vector.broadcast %24 : vector<1x32xf32> to vector<8x32xf32>
    %26 = arith.addf %23, %25 : vector<8x32xf32>
    %cst_15 = arith.constant 0.000000e+00 : f32
    %27 = vector.broadcast %cst_15 : f32 to vector<8x32xf32>
    %28 = arith.maximumf %26, %27 : vector<8x32xf32>
    %c0_16 = arith.constant 0 : index
    %c0_17 = arith.constant 0 : index
    %29 = vector.load %arg8[%c0_16, %c0_17] : memref<1x32xf32, #tpu.memory_space<vmem>>, vector<1x32xf32>
    %cst_18 = arith.constant dense<0.000000e+00> : vector<1x8xf32>
    %30 = tpu.matmul %29, %28, %cst_18 {dimension_numbers = #tpu.dot_dimension_numbers<[1], [1], [0], [0], [0, 0, 1, 0], [], []>} : vector<1x32xf32>, vector<8x32xf32>, vector<1x8xf32> -> vector<1x8xf32>
    %c0_19 = arith.constant 0 : index
    %c0_20 = arith.constant 0 : index
    %31 = vector.load %arg9[%c0_19, %c0_20] : memref<1x1xf32, #tpu.memory_space<vmem>>, vector<1x1xf32>
    %32 = vector.broadcast %31 : vector<1x1xf32> to vector<1x8xf32>
    %33 = arith.addf %30, %32 : vector<1x8xf32>
    %c0_21 = arith.constant 0 : index
    %c0_22 = arith.constant 0 : index
    %34 = vector.load %arg10[%c0_21, %c0_22] : memref<1x8xf32, #tpu.memory_space<vmem>>, vector<1x8xf32>
    tpu.vector_store %arg10[%c0_21, %c0_22], %33 {strides = array<i32>} : memref<1x8xf32, #tpu.memory_space<vmem>>, vector<1x8xf32>,
    return
  }
  func.func @transform_0(%arg0: i32) -> (i32, i32) {
    %c0_i32 = arith.constant 0 : i32
    %c0_i32_0 = arith.constant 0 : i32
    return %arg0, %c0_i32 : i32, i32
  }
  func.func @transform_1(%arg0: i32) -> (i32, i32) {
    %c0_i32 = arith.constant 0 : i32
    %c0_i32_0 = arith.constant 0 : i32
    return %arg0, %c0_i32 : i32, i32
  }
  func.func @transform_2(%arg0: i32) -> (i32, i32) {
    %c0_i32 = arith.constant 0 : i32
    %c0_i32_0 = arith.constant 0 : i32
    %c0_i32_1 = arith.constant 0 : i32
    return %c0_i32, %c0_i32_0 : i32, i32
  }
  func.func @transform_3(%arg0: i32) -> (i32, i32) {
    %c0_i32 = arith.constant 0 : i32
    %c0_i32_0 = arith.constant 0 : i32
    %c0_i32_1 = arith.constant 0 : i32
    return %c0_i32, %c0_i32_0 : i32, i32
  }
  func.func @transform_4(%arg0: i32) -> (i32, i32) {
    %c0_i32 = arith.constant 0 : i32
    %c0_i32_0 = arith.constant 0 : i32
    %c0_i32_1 = arith.constant 0 : i32
    return %c0_i32, %c0_i32_0 : i32, i32
  }
  func.func @transform_5(%arg0: i32) -> (i32, i32) {
    %c0_i32 = arith.constant 0 : i32
    %c0_i32_0 = arith.constant 0 : i32
    %c0_i32_1 = arith.constant 0 : i32
    return %c0_i32, %c0_i32_0 : i32, i32
  }
  func.func @transform_6(%arg0: i32) -> (i32, i32) {
    %c0_i32 = arith.constant 0 : i32
    %c0_i32_0 = arith.constant 0 : i32
    %c0_i32_1 = arith.constant 0 : i32
    return %c0_i32, %c0_i32_0 : i32, i32
  }
  func.func @transform_7(%arg0: i32) -> (i32, i32) {
    %c0_i32 = arith.constant 0 : i32
    %c0_i32_0 = arith.constant 0 : i32
    %c0_i32_1 = arith.constant 0 : i32
    return %c0_i32, %c0_i32_0 : i32, i32
  }
  func.func @transform_8(%arg0: i32) -> (i32, i32) {
    %c0_i32 = arith.constant 0 : i32
    %c0_i32_0 = arith.constant 0 : i32
    %c0_i32_1 = arith.constant 0 : i32
    return %c0_i32, %c0_i32_0 : i32, i32
  }
  func.func @transform_9(%arg0: i32) -> (i32, i32) {
    %c0_i32 = arith.constant 0 : i32
    %c0_i32_0 = arith.constant 0 : i32
    return %c0_i32, %arg0 : i32, i32
  }
}

</mosaic_0001>

<llo_original>
// kernel: tpu_custom_call.1
$region0: #{tpu_custom_call.1}
  #allocation0 [shape = 'u32[]', space=smem, size = 0x4, offset = 0x4, fixed_abs, tag = 'smem constant byte address 0x4 - core index']
  #allocation1 [shape = 'u32[144,128]{1,0:T(1,128)}', space=vmem, size = 0x12000, scoped, tag = 'internal scratch']
  #allocation2 [shape = 'f32[1,1]{1,0:T(1,128)S(1)}', space=vmem, size = 0x200, scoped, tag = 'scoped memory for tpu_custom_call.1']
  %s0 = inlined_call_operand.vmem [shape: f32[8,24], index: 0, kind: input, shape index: {}]
  %s1 = inlined_call_operand.vmem [shape: f32[8,2], index: 1, kind: input, shape index: {}]
  %s2 = inlined_call_operand.vmem [shape: f32[24,64], index: 2, kind: input, shape index: {}]
  %s3 = inlined_call_operand.vmem [shape: f32[1,64], index: 3, kind: input, shape index: {}]
  %s4 = inlined_call_operand.vmem [shape: f32[64,32], index: 4, kind: input, shape index: {}]
  %s5 = inlined_call_operand.vmem [shape: f32[2,32], index: 5, kind: input, shape index: {}]
  %s6 = inlined_call_operand.vmem [shape: f32[1,32], index: 6, kind: input, shape index: {}]
  %s7 = inlined_call_operand.vmem [shape: f32[1,32], index: 7, kind: input, shape index: {}]
  %s8 = inlined_call_operand.<no memory space> [shape: f32[1,1], index: 8, kind: input, shape index: {}]
  %s9 = inlined_call_operand.hbm [shape: f32[1,8], index: 9, kind: output, shape index: {}]
  %s10 = sld [smem:[#allocation0]]
  $region46: #{tpu_custom_call.1} parent=0
    _
  %s12 = ssub.s32 1, %s10
  %s13 = scalar_select 0, %s12, %s10
  %v14 = vstv %s8
  %15 = vst [vmem:[#allocation2] sm:$0x1] %v14
  $region1: #{tpu_custom_call.1} parent=0
    #allocation3 [shape = 'u8[512]{0}', space=vmem, size = 0x400, scoped, tag = 'output window, operand 0, single buffered']
    #allocation4 [shape = 's32[1]{0}', space=sflag, size = 0x4, scoped, tag = 'scoped memory for tpu_custom_call.1']
    %16 = vsyncpa [#allocation4], 0
    // Predicated region
    $region2: #{tpu_custom_call.1} parent=1 // pred_check
      _
    $region3: #{tpu_custom_call.1} parent=1 // pred_check_branch
      %18 = sbr.rel (0) target = $region5
    $region4: #{tpu_custom_call.1} parent=1 // pred_region
      _
    $region5: #{tpu_custom_call.1} parent=1 // pred_fallthru
      _
    // Predicated region
    $region6: #{tpu_custom_call.1} parent=1 // pred_check
      _
    $region7: #{tpu_custom_call.1} parent=1 // pred_check_branch
      %20 = sbr.rel (0) target = $region9
    $region8: #{tpu_custom_call.1} parent=1 // pred_region
      _
    $region9: #{tpu_custom_call.1} parent=1 // pred_fallthru
      _
    // Predicated region
    $region10: #{tpu_custom_call.1} parent=1 // pred_check
      _
    $region11: #{tpu_custom_call.1} parent=1 // pred_check_branch
      %22 = sbr.rel (0) target = $region13
    $region12: #{tpu_custom_call.1} parent=1 // pred_region
      _
    $region13: #{tpu_custom_call.1} parent=1 // pred_fallthru
      _
    // Predicated region
    $region14: #{tpu_custom_call.1} parent=1 // pred_check
      _
    $region15: #{tpu_custom_call.1} parent=1 // pred_check_branch
      %24 = sbr.rel (0) target = $region17
    $region16: #{tpu_custom_call.1} parent=1 // pred_region
      _
    $region17: #{tpu_custom_call.1} parent=1 // pred_fallthru
      _
    // Predicated region
    $region18: #{tpu_custom_call.1} parent=1 // pred_check
      _
    $region19: #{tpu_custom_call.1} parent=1 // pred_check_branch
      %26 = sbr.rel (0) target = $region21
    $region20: #{tpu_custom_call.1} parent=1 // pred_region
      _
    $region21: #{tpu_custom_call.1} parent=1 // pred_fallthru
      _
    // Predicated region
    $region22: #{tpu_custom_call.1} parent=1 // pred_check
      _
    $region23: #{tpu_custom_call.1} parent=1 // pred_check_branch
      %28 = sbr.rel (0) target = $region25
    $region24: #{tpu_custom_call.1} parent=1 // pred_region
      _
    $region25: #{tpu_custom_call.1} parent=1 // pred_fallthru
      _
    // Predicated region
    $region26: #{tpu_custom_call.1} parent=1 // pred_check
      _
    $region27: #{tpu_custom_call.1} parent=1 // pred_check_branch
      %30 = sbr.rel (0) target = $region29
    $region28: #{tpu_custom_call.1} parent=1 // pred_region
      _
    $region29: #{tpu_custom_call.1} parent=1 // pred_fallthru
      _
    // Predicated region
    $region30: #{tpu_custom_call.1} parent=1 // pred_check
      _
    $region31: #{tpu_custom_call.1} parent=1 // pred_check_branch
      %32 = sbr.rel (0) target = $region33
    $region32: #{tpu_custom_call.1} parent=1 // pred_region
      _
    $region33: #{tpu_custom_call.1} parent=1 // pred_fallthru
      _
    // Predicated region
    $region34: #{tpu_custom_call.1} parent=1 // pred_check
      _
    $region35: #{tpu_custom_call.1} parent=1 // pred_check_branch
      %34 = sbr.rel (0) target = $region37
    $region36: #{tpu_custom_call.1} parent=1 // pred_region
      _
    $region37: #{tpu_custom_call.1} parent=1 // pred_fallthru
      _
    %v35 = vld [vmem:[%s0] sm:$0xff]
    %v36 = vld [vmem:[%s2] sm:$0xff]
    %v37 = vld [vmem:[%s2 + $0x8] sm:$0xff]
    %v38 = vld [vmem:[%s2 + $0x10] sm:$0xff]
    %v39 = vld [vmem:[%s3] sm:$0x1]
    %v41 = vlaneseq
    %v42 = vshrl.u32 %v41, 7
    %v43 = vsub.s32 0, %v42
    %v44 = vrot.slane %v39, %v43
    %vm46 = vcmask 195584
    %v48 = vsel %vm46, %v35, 0
    %50 = vmatprep.subr.mxu0 0.0
    %51 = vmatpush1.msra.mxu0 %v36
    %52 = vmatprep.subr.mxu0 0.0
    %53 = vmatpush1.msra.mxu0 %v37
    %54 = vmatprep.subr.mxu0 0.0
    %55 = vmatpush1.msra.mxu0 %v38
    %56 = vmatprep.subr.mxu0 0.0
    %57 = vmatpush1.msra.mxu0 0.0
    %58 = vmatprep.subr.mxu0 0.0
    %59 = vmatpush1.msra.mxu0 0.0
    %60 = vmatprep.subr.mxu0 0.0
    %61 = vmatpush1.msra.mxu0 0.0
    %62 = vmatprep.subr.mxu0 0.0
    %63 = vmatpush1.msra.mxu0 0.0
    %64 = vmatprep.subr.mxu0 0.0
    %65 = vmatpush1.msra.mxu0 0.0
    %66 = vmatprep.subr.mxu0 0.0
    %67 = vmatpush1.msra.mxu0 0.0
    %68 = vmatprep.subr.mxu0 0.0
    %69 = vmatpush1.msra.mxu0 0.0
    %70 = vmatprep.subr.mxu0 0.0
    %71 = vmatpush1.msra.mxu0 0.0
    %72 = vmatprep.subr.mxu0 0.0
    %73 = vmatpush1.msra.mxu0 0.0
    %74 = vmatprep.subr.mxu0 0.0
    %75 = vmatpush1.msra.mxu0 0.0
    %76 = vmatprep.subr.mxu0 0.0
    %77 = vmatpush1.msra.mxu0 0.0
    %78 = vmatprep.subr.mxu0 0.0
    %79 = vmatpush1.msra.mxu0 0.0
    %80 = vmatprep.subr.mxu0 0.0
    %81 = vmatpush1.msra.mxu0 0.0
    %82 = vmatprep.subr.mxu0 0.0
    %83 = vmatpush1.msra.mxu0 0.0
    %84 = vmatprep.subr.mxu0 0.0
    %85 = vmatpush1.msra.mxu0 0.0
    %86 = vmatprep.subr.mxu0 0.0
    %87 = vmatpush1.msra.mxu0 0.0
    %88 = vmatprep.subr.mxu0 0.0
    %89 = vmatpush1.msra.mxu0 0.0
    %90 = vmatprep.subr.mxu0 0.0
    %91 = vmatpush1.msra.mxu0 0.0
    %92 = vmatprep.subr.mxu0 0.0
    %93 = vmatpush1.msra.mxu0 0.0
    %94 = vmatprep.subr.mxu0 0.0
    %95 = vmatpush1.msra.mxu0 0.0
    %96 = vmatprep.subr.mxu0 0.0
    %97 = vmatpush1.msra.mxu0 0.0
    %98 = vmatprep.subr.mxu0 0.0
    %99 = vmatpush1.msra.mxu0 0.0
    %100 = vmatprep.subr.mxu0 0.0
    %101 = vmatpush1.msra.mxu0 0.0
    %102 = vmatprep.subr.mxu0 0.0
    %103 = vmatpush1.msra.mxu0 0.0
    %104 = vmatprep.subr.mxu0 0.0
    %105 = vmatpush1.msra.mxu0 0.0
    %106 = vmatprep.subr.mxu0 0.0
    %107 = vmatpush1.msra.mxu0 0.0
    %108 = vmatprep.subr.mxu0 0.0
    %109 = vmatpush1.msra.mxu0 0.0
    %110 = vmatprep.subr.mxu0 0.0
    %111 = vmatpush1.msra.mxu0 0.0
    %112 = vmatprep.subr.mxu0 0.0
    %113 = vmatpush1.msra.mxu0 0.0
    %114 = vmatprep.mubr.f32.mxu0 0.0
    %115 = vmatmul.mubr.f32.gmra.mrb[0].mxu0 %v48
    %v116 = vpop.f32.mrb[0].mxu0
    %v117 = vadd.f32 %v44, %v116
    %v118 = vpop.f32.mrb[0].mxu0
    %119 = vdwg.mxu0
    %v120 = vmax.f32 %v117, 0.0
    %v121 = vld [vmem:[%s4] sm:$0xff]
    %v122 = vld [vmem:[%s4 + $0x8] sm:$0xff]
    %v123 = vld [vmem:[%s4 + $0x10] sm:$0xff]
    %v124 = vld [vmem:[%s4 + $0x18] sm:$0xff]
    %v125 = vld [vmem:[%s4 + $0x20] sm:$0xff]
    %v126 = vld [vmem:[%s4 + $0x28] sm:$0xff]
    %v127 = vld [vmem:[%s4 + $0x30] sm:$0xff]
    %v128 = vld [vmem:[%s4 + $0x38] sm:$0xff]
    %v129 = vld [vmem:[%s1] sm:$0xff]
    %v130 = vld [vmem:[%s5] sm:$0x3]
    %132 = vset.pattern.permute.xlu0 0
    %133 = vperm.xlu0 %132, %v129
    %v134 = vpop.permute.xlu0 %133
    %v136 = vlaneseq
    %v137 = vshrl.u32 %v136, 7
    %v138 = vsub.s32 0, %v137
    %v139 = vrot.slane %v130, %v138
    %v140 = vmul.f32 %v134, %v139
    %vm141 = vcmask 523264
    %v143 = vsel %vm141, %v120, 0
    %145 = vmatprep.subr.mxu0 0.0
    %146 = vmatpush1.msra.mxu0 %v121
    %147 = vmatprep.subr.mxu0 0.0
    %148 = vmatpush1.msra.mxu0 %v122
    %149 = vmatprep.subr.mxu0 0.0
    %150 = vmatpush1.msra.mxu0 %v123
    %151 = vmatprep.subr.mxu0 0.0
    %152 = vmatpush1.msra.mxu0 %v124
    %153 = vmatprep.subr.mxu0 0.0
    %154 = vmatpush1.msra.mxu0 %v125
    %155 = vmatprep.subr.mxu0 0.0
    %156 = vmatpush1.msra.mxu0 %v126
    %157 = vmatprep.subr.mxu0 0.0
    %158 = vmatpush1.msra.mxu0 %v127
    %159 = vmatprep.subr.mxu0 0.0
    %160 = vmatpush1.msra.mxu0 %v128
    %161 = vmatprep.subr.mxu0 0.0
    %162 = vmatpush1.msra.mxu0 0.0
    %163 = vmatprep.subr.mxu0 0.0
    %164 = vmatpush1.msra.mxu0 0.0
    %165 = vmatprep.subr.mxu0 0.0
    %166 = vmatpush1.msra.mxu0 0.0
    %167 = vmatprep.subr.mxu0 0.0
    %168 = vmatpush1.msra.mxu0 0.0
    %169 = vmatprep.subr.mxu0 0.0
    %170 = vmatpush1.msra.mxu0 0.0
    %171 = vmatprep.subr.mxu0 0.0
    %172 = vmatpush1.msra.mxu0 0.0
    %173 = vmatprep.subr.mxu0 0.0
    %174 = vmatpush1.msra.mxu0 0.0
    %175 = vmatprep.subr.mxu0 0.0
    %176 = vmatpush1.msra.mxu0 0.0
    %177 = vmatprep.subr.mxu0 0.0
    %178 = vmatpush1.msra.mxu0 0.0
    %179 = vmatprep.subr.mxu0 0.0
    %180 = vmatpush1.msra.mxu0 0.0
    %181 = vmatprep.subr.mxu0 0.0
    %182 = vmatpush1.msra.mxu0 0.0
    %183 = vmatprep.subr.mxu0 0.0
    %184 = vmatpush1.msra.mxu0 0.0
    %185 = vmatprep.subr.mxu0 0.0
    %186 = vmatpush1.msra.mxu0 0.0
    %187 = vmatprep.subr.mxu0 0.0
    %188 = vmatpush1.msra.mxu0 0.0
    %189 = vmatprep.subr.mxu0 0.0
    %190 = vmatpush1.msra.mxu0 0.0
    %191 = vmatprep.subr.mxu0 0.0
    %192 = vmatpush1.msra.mxu0 0.0
    %193 = vmatprep.subr.mxu0 0.0
    %194 = vmatpush1.msra.mxu0 0.0
    %195 = vmatprep.subr.mxu0 0.0
    %196 = vmatpush1.msra.mxu0 0.0
    %197 = vmatprep.subr.mxu0 0.0
    %198 = vmatpush1.msra.mxu0 0.0
    %199 = vmatprep.subr.mxu0 0.0
    %200 = vmatpush1.msra.mxu0 0.0
    %201 = vmatprep.subr.mxu0 0.0
    %202 = vmatpush1.msra.mxu0 0.0
    %203 = vmatprep.subr.mxu0 0.0
    %204 = vmatpush1.msra.mxu0 0.0
    %205 = vmatprep.subr.mxu0 0.0
    %206 = vmatpush1.msra.mxu0 0.0
    %207 = vmatprep.subr.mxu0 0.0
    %208 = vmatpush1.msra.mxu0 0.0
    %209 = vmatprep.mubr.f32.mxu0 0.0
    %210 = vmatmul.mubr.f32.gmra.mrb[0].mxu0 %v143
    %v211 = vpop.f32.mrb[0].mxu0
    %v212 = vadd.f32 %v140, %v211
    %v213 = vpop.f32.mrb[0].mxu0
    %214 = vdwg.mxu0
    %215 = vset.pattern.permute.xlu0 1
    %216 = vperm.xlu0 %215, %v129
    %v217 = vpop.permute.xlu0 %216
    %v219 = vlaneseq
    %v220 = vshrl.u32 %v219, 7
    %v221 = vsub.s32 1, %v220
    %v222 = vrot.slane %v130, %v221
    %v223 = vmul.f32 %v217, %v222
    %v224 = vadd.f32 %v212, %v223
    %v225 = vld [vmem:[%s6] sm:$0x1]
    %v227 = vlaneseq
    %v228 = vshrl.u32 %v227, 7
    %v229 = vsub.s32 0, %v228
    %v230 = vrot.slane %v225, %v229
    %v232 = vadd.f32 %v224, %v230
    %v233 = vmax.f32 %v232, 0.0
    %v234 = vld [vmem:[%s7] sm:$0x1]
    %v235 = vld [vmem:[#allocation2] sm:$0x1]
    %237 = vset.pattern.permute.xlu0 0
    %238 = vperm.xlu0 %237, %v235
    %v239 = vpop.permute.xlu0 %238
    %v241 = vlaneseq
    %v242 = vshrl.u32 %v241, 7
    %v243 = vsub.s32 0, %v242
    %v244 = vrot.slane %v239, %v243
    %vm245 = vcmask 261120
    %v247 = vsel %vm245, %v234, 0
    %v250 = vsel %vm245, %v233, 0
    %252 = vmatprep.subr.mxu0 0.0
    %253 = vmatpush1.xpose.msra.mxu0 %v250
    %254 = vmatprep.subr.mxu0 0.0
    %255 = vmatpush1.xpose.msra.mxu0 0.0
    %256 = vmatprep.subr.mxu0 0.0
    %257 = vmatpush1.xpose.msra.mxu0 0.0
    %258 = vmatprep.subr.mxu0 0.0
    %259 = vmatpush1.xpose.msra.mxu0 0.0
    %260 = vmatprep.subr.mxu0 0.0
    %261 = vmatpush1.xpose.msra.mxu0 0.0
    %262 = vmatprep.subr.mxu0 0.0
    %263 = vmatpush1.xpose.msra.mxu0 0.0
    %264 = vmatprep.subr.mxu0 0.0
    %265 = vmatpush1.xpose.msra.mxu0 0.0
    %266 = vmatprep.subr.mxu0 0.0
    %267 = vmatpush1.xpose.msra.mxu0 0.0
    %268 = vmatprep.subr.mxu0 0.0
    %269 = vmatpush1.xpose.msra.mxu0 0.0
    %270 = vmatprep.subr.mxu0 0.0
    %271 = vmatpush1.xpose.msra.mxu0 0.0
    %272 = vmatprep.subr.mxu0 0.0
    %273 = vmatpush1.xpose.msra.mxu0 0.0
    %274 = vmatprep.subr.mxu0 0.0
    %275 = vmatpush1.xpose.msra.mxu0 0.0
    %276 = vmatprep.subr.mxu0 0.0
    %277 = vmatpush1.xpose.msra.mxu0 0.0
    %278 = vmatprep.subr.mxu0 0.0
    %279 = vmatpush1.xpose.msra.mxu0 0.0
    %280 = vmatprep.subr.mxu0 0.0
    %281 = vmatpush1.xpose.msra.mxu0 0.0
    %282 = vmatprep.subr.mxu0 0.0
    %283 = vmatpush1.xpose.msra.mxu0 0.0
    %284 = vmatprep.subr.mxu0 0.0
    %285 = vmatpush1.xpose.msra.mxu0 0.0
    %286 = vmatprep.subr.mxu0 0.0
    %287 = vmatpush1.xpose.msra.mxu0 0.0
    %288 = vmatprep.subr.mxu0 0.0
    %289 = vmatpush1.xpose.msra.mxu0 0.0
    %290 = vmatprep.subr.mxu0 0.0
    %291 = vmatpush1.xpose.msra.mxu0 0.0
    %292 = vmatprep.subr.mxu0 0.0
    %293 = vmatpush1.xpose.msra.mxu0 0.0
    %294 = vmatprep.subr.mxu0 0.0
    %295 = vmatpush1.xpose.msra.mxu0 0.0
    %296 = vmatprep.subr.mxu0 0.0
    %297 = vmatpush1.xpose.msra.mxu0 0.0
    %298 = vmatprep.subr.mxu0 0.0
    %299 = vmatpush1.xpose.msra.mxu0 0.0
    %300 = vmatprep.subr.mxu0 0.0
    %301 = vmatpush1.xpose.msra.mxu0 0.0
    %302 = vmatprep.subr.mxu0 0.0
    %303 = vmatpush1.xpose.msra.mxu0 0.0
    %304 = vmatprep.subr.mxu0 0.0
    %305 = vmatpush1.xpose.msra.mxu0 0.0
    %306 = vmatprep.subr.mxu0 0.0
    %307 = vmatpush1.xpose.msra.mxu0 0.0
    %308 = vmatprep.subr.mxu0 0.0
    %309 = vmatpush1.xpose.msra.mxu0 0.0
    %310 = vmatprep.subr.mxu0 0.0
    %311 = vmatpush1.xpose.msra.mxu0 0.0
    %312 = vmatprep.subr.mxu0 0.0
    %313 = vmatpush1.xpose.msra.mxu0 0.0
    %314 = vmatprep.subr.mxu0 0.0
    %315 = vmatpush1.xpose.msra.mxu0 0.0
    %316 = vmatprep.mubr.f32.mxu0 0.0
    %317 = vmatmul.mubr.f32.gmra.mrb[0].mxu0 %v247
    %v318 = vpop.f32.mrb[0].mxu0
    %v319 = vadd.f32 %v244, %v318
    %v320 = vpop.f32.mrb[0].mxu0
    %321 = vdwg.mxu0
    %vm322 = vcmask 57344
    %323 = vst.msk [vmem:[#allocation3] sm:$0x1] %vm322, %v319
    // Predicated region
    $region38: #{tpu_custom_call.1} parent=1 // pred_check
      _
    $region39: #{tpu_custom_call.1} parent=1 // pred_check_branch
      %325 = sbr.rel (0) target = $region41
    $region40: #{tpu_custom_call.1} parent=1 // pred_region
      %s327 = ssub.s32 16, 16
      %328 = vsyncadd [#allocation4], %s327
      %s330 = sshll.u32 [#allocation3], 4
      %s331 = int_to_ptr.vmem [resolvable:$true] %s330
      %333 = dma.vmem_to_hbm [thread:$0]  %s331, 16, %s9, [#allocation4]
    $region41: #{tpu_custom_call.1} parent=1 // pred_fallthru
      _
    // Predicated region
    $region42: #{tpu_custom_call.1} parent=1 // pred_check
      _
    $region43: #{tpu_custom_call.1} parent=1 // pred_check_branch
      %335 = sbr.rel (0) target = $region45
    $region44: #{tpu_custom_call.1} parent=1 // pred_region
      %336 = dma.done [#allocation4], 16
    $region45: #{tpu_custom_call.1} parent=1 // pred_fallthru
      _
    %337 = vsyncpa [#allocation4], 1

</llo_original>
